<compile_context>
chip_gen: v5e
topology: v5e:2x2
jax: 0.10.0
libtpu: 0.0.40
codegen_flags: <defaults>
</compile_context>

<pallas_src>
import jax
import jax.numpy as jnp
from jax.experimental import pallas as pl
from jax.experimental.pallas import tpu as pltpu


def _concat_kernel(x1_ref, x2_ref, o_ref):
    # Blocks are (bn, L1), (bn, L2), (bn, L1+L2).  Write each input into its
    # disjoint lane slab of the output block; slab offsets are multiples of
    # 128 lanes for typical spatial sizes -> unmasked full-width stores.
    l1 = x1_ref.shape[1]
    o_ref[:, :l1] = x1_ref[...]
    o_ref[:, l1:] = x2_ref[...]


def _pick_batch_tile(n: int, row_bytes: int, itemsize: int) -> int:
    """Rows per grid step.

    Big enough (~8 MiB of in+out traffic per step) to amortize per-step
    pipeline overhead, sublane-aligned so blocks stay unpadded, and — when
    affordable — leaving >= 2 grid steps so both v7x TensorCores get work.
    """
    sub = {4: 8, 2: 16, 1: 32}.get(itemsize, 8)   # sublane tile per dtype width
    target = 8 << 20                               # ~8 MiB in+out per grid step
    bn = max(1, target // max(row_bytes, 1))
    if bn >= n:
        # Whole batch fits in one step; optionally split in two for megacore
        # as long as each block stays comfortably large (>= ~1 MiB).
        half = (n // 2 // sub) * sub
        if half >= sub and half * row_bytes >= (1 << 20):
            return half
        return n                                   # full extent: always legal
    return max(sub, (bn // sub) * sub)             # sublane-aligned tile


def concatenate(input1: jax.Array, input2: jax.Array) -> jax.Array:
    """torch.cat((input1, input2), dim=1) for N,C,... tensors via Pallas."""
    assert input1.dtype == input2.dtype
    assert input1.ndim == input2.ndim and input1.ndim >= 2
    n, c1 = input1.shape[0], input1.shape[1]
    n2, c2 = input2.shape[0], input2.shape[1]
    rest = input1.shape[2:]
    assert n == n2 and input2.shape[2:] == rest, "non-concat dims must match"

    hw = 1
    for d in rest:
        hw *= int(d)
    l1, l2 = c1 * hw, c2 * hw

    # Lane-major 2D views: concat along dim=1 of N,C,H,W is exactly the
    # row-wise concatenation of the flattened (C*H*W) rows.
    x1 = input1.reshape(n, l1)
    x2 = input2.reshape(n, l2)

    itemsize = jnp.dtype(input1.dtype).itemsize
    row_bytes = 2 * (l1 + l2) * itemsize           # load + store per batch row
    bn = _pick_batch_tile(n, row_bytes, itemsize)
    grid = (pl.cdiv(n, bn),)                       # ragged edge block is padded

    # VMEM budget: double-buffered (in + out) block plus headroom, capped at
    # 48 MiB so we never over-subscribe v7x's 64 MiB per-TC VMEM.
    per_step = bn * row_bytes
    vmem_bytes = int(min(max(2 * per_step + (4 << 20), 16 << 20), 48 << 20))

    out2 = pl.pallas_call(
        _concat_kernel,
        out_shape=jax.ShapeDtypeStruct((n, l1 + l2), input1.dtype),
        grid=grid,
        in_specs=[
            pl.BlockSpec((bn, l1), lambda i: (i, 0)),
            pl.BlockSpec((bn, l2), lambda i: (i, 0)),
        ],
        out_specs=pl.BlockSpec((bn, l1 + l2), lambda i: (i, 0)),
        compiler_params=pltpu.CompilerParams(
            dimension_semantics=("parallel",),
            vmem_limit_bytes=vmem_bytes,
        ),
    )(x1, x2)

    return out2.reshape((n, c1 + c2) + rest)


if __name__ == "__main__":
    key = jax.random.PRNGKey(0)
    k1, k2 = jax.random.split(key)
    # NCHW inputs; concat along channels: (2,4,16,16) ++ (2,6,16,16) -> (2,10,16,16)
    x1 = jax.random.normal(k1, (2, 4, 16, 16), dtype=jnp.float32)
    x2 = jax.random.normal(k2, (2, 6, 16, 16), dtype=jnp.float32)

    out = concatenate(x1, x2)
    out = jax.block_until_ready(out)

    ref = jnp.concatenate([x1, x2], axis=1)
    assert out.shape == (2, 10, 16, 16)
    assert out.dtype == x1.dtype
    assert jnp.array_equal(out, ref)

    print("KERNEL_OK")
</pallas_src>

<mosaic_0001>
module attributes {stable_mosaic.version = 11 : i64} {
  func.func @_concat_kernel(%arg0: i32, %arg1: memref<2x1024xf32, #tpu.memory_space<vmem>>, %arg2: memref<2x1536xf32, #tpu.memory_space<vmem>>, %arg3: memref<2x2560xf32, #tpu.memory_space<vmem>>) attributes {dimension_semantics = [#tpu.dimension_semantics<parallel>], iteration_bounds = array<i64: 1>, scalar_prefetch = 0 : i64, scratch_operands = 0 : i64, tpu.core_type = #tpu.core_type<tc>, window_params = [{transform_indices = @transform_0, window_bounds = array<i64: 2, 1024>}, {transform_indices = @transform_1, window_bounds = array<i64: 2, 1536>}, {transform_indices = @transform_2, window_bounds = array<i64: 2, 2560>}]} {
    %c0 = arith.constant 0 : index
    %c0_0 = arith.constant 0 : index
    %0 = vector.load %arg1[%c0, %c0_0] : memref<2x1024xf32, #tpu.memory_space<vmem>>, vector<2x1024xf32>
    %c0_1 = arith.constant 0 : index
    %c0_2 = arith.constant 0 : index
    %1 = vector.load %arg3[%c0_1, %c0_2] : memref<2x2560xf32, #tpu.memory_space<vmem>>, vector<2x1024xf32>
    tpu.vector_store %arg3[%c0_1, %c0_2], %0 {strides = array<i32>} : memref<2x2560xf32, #tpu.memory_space<vmem>>, vector<2x1024xf32>,
    %c0_3 = arith.constant 0 : index
    %c0_4 = arith.constant 0 : index
    %2 = vector.load %arg2[%c0_3, %c0_4] : memref<2x1536xf32, #tpu.memory_space<vmem>>, vector<2x1536xf32>
    %c0_5 = arith.constant 0 : index
    %c1024 = arith.constant 1024 : index
    %3 = vector.load %arg3[%c0_5, %c1024] : memref<2x2560xf32, #tpu.memory_space<vmem>>, vector<2x1536xf32>
    tpu.vector_store %arg3[%c0_5, %c1024], %2 {strides = array<i32>} : memref<2x2560xf32, #tpu.memory_space<vmem>>, vector<2x1536xf32>,
    return
  }
  func.func @transform_0(%arg0: i32) -> (i32, i32) {
    %c0_i32 = arith.constant 0 : i32
    %c0_i32_0 = arith.constant 0 : i32
    return %arg0, %c0_i32 : i32, i32
  }
  func.func @transform_1(%arg0: i32) -> (i32, i32) {
    %c0_i32 = arith.constant 0 : i32
    %c0_i32_0 = arith.constant 0 : i32
    return %arg0, %c0_i32 : i32, i32
  }
  func.func @transform_2(%arg0: i32) -> (i32, i32) {
    %c0_i32 = arith.constant 0 : i32
    %c0_i32_0 = arith.constant 0 : i32
    return %arg0, %c0_i32 : i32, i32
  }
}

</mosaic_0001>

<llo_original>
// kernel: tpu_custom_call.1
$region0: #{tpu_custom_call.1}
  #allocation0 [shape = 'u32[]', space=smem, size = 0x4, offset = 0x4, fixed_abs, tag = 'smem constant byte address 0x4 - core index']
  #allocation1 [shape = 'u32[72,128]{1,0:T(1,128)}', space=vmem, size = 0x9000, scoped, tag = 'internal scratch']
  %s0 = inlined_call_operand.hbm [shape: f32[2,1024], index: 0, kind: input, shape index: {}]
  %s1 = inlined_call_operand.hbm [shape: f32[2,1536], index: 1, kind: input, shape index: {}]
  %s2 = inlined_call_operand.hbm [shape: f32[2,2560], index: 2, kind: output, shape index: {}]
  %s3 = sld [smem:[#allocation0]]
  $region26: #{tpu_custom_call.1} parent=0
    _
  %s5 = ssub.s32 1, %s3
  %s6 = scalar_select 0, %s5, %s3
  $region1: #{tpu_custom_call.1} parent=0
    #allocation2 [shape = 'u8[8192]{0}', space=vmem, size = 0x2000, scoped, tag = 'input window, operand 0, single buffered']
    #allocation3 [shape = 's32[1]{0}', space=sflag, size = 0x4, scoped, tag = 'scoped memory for tpu_custom_call.1']
    #allocation4 [shape = 's32[1]{0}', space=sflag, size = 0x4, scoped, tag = 'scoped memory for tpu_custom_call.1']
    #allocation5 [shape = 'u8[12288]{0}', space=vmem, size = 0x3000, scoped, tag = 'input window, operand 1, single buffered']
    #allocation6 [shape = 's32[1]{0}', space=sflag, size = 0x4, scoped, tag = 'scoped memory for tpu_custom_call.1']
    #allocation7 [shape = 'u8[20480]{0}', space=vmem, size = 0x5000, scoped, tag = 'output window, operand 0, single buffered']
    %7 = vsyncpa [#allocation3], 0
    %8 = vsyncpa [#allocation6], 0
    %9 = vsyncpa [#allocation4], 0
    // Predicated region
    $region2: #{tpu_custom_call.1} parent=1 // pred_check
      _
    $region3: #{tpu_custom_call.1} parent=1 // pred_check_branch
      %11 = sbr.rel (0) target = $region5
    $region4: #{tpu_custom_call.1} parent=1 // pred_region
      %13 = vsyncadd [#allocation3], 0
      %s15 = sshll.u32 %s0, 4
      %s16 = int_to_ptr.hbm [resolvable:$true] %s15
      %s17 = sshll.u32 [#allocation2], 4
      %s18 = int_to_ptr.vmem [resolvable:$true] %s17
      %20 = dma.hbm_to_vmem [thread:$0]  %s16, 256, %s18, [#allocation3]
    $region5: #{tpu_custom_call.1} parent=1 // pred_fallthru
      _
    // Predicated region
    $region6: #{tpu_custom_call.1} parent=1 // pred_check
      _
    $region7: #{tpu_custom_call.1} parent=1 // pred_check_branch
      %22 = sbr.rel (0) target = $region9
    $region8: #{tpu_custom_call.1} parent=1 // pred_region
      %24 = vsyncadd [#allocation6], 0
      %s26 = sshll.u32 %s1, 4
      %s27 = int_to_ptr.hbm [resolvable:$true] %s26
      %s28 = sshll.u32 [#allocation5], 4
      %s29 = int_to_ptr.vmem [resolvable:$true] %s28
      %31 = dma.hbm_to_vmem [thread:$0]  %s27, 384, %s29, [#allocation6]
    $region9: #{tpu_custom_call.1} parent=1 // pred_fallthru
      _
    // Predicated region
    $region10: #{tpu_custom_call.1} parent=1 // pred_check
      _
    $region11: #{tpu_custom_call.1} parent=1 // pred_check_branch
      %33 = sbr.rel (0) target = $region13
    $region12: #{tpu_custom_call.1} parent=1 // pred_region
      %35 = dma.done [#allocation3], 256
    $region13: #{tpu_custom_call.1} parent=1 // pred_fallthru
      _
    // Predicated region
    $region14: #{tpu_custom_call.1} parent=1 // pred_check
      _
    $region15: #{tpu_custom_call.1} parent=1 // pred_check_branch
      %37 = sbr.rel (0) target = $region17
    $region16: #{tpu_custom_call.1} parent=1 // pred_region
      %39 = dma.done [#allocation6], 384
    $region17: #{tpu_custom_call.1} parent=1 // pred_fallthru
      _
    %v40 = vld [vmem:[#allocation2] sm:$0xff]
    %v41 = vld [vmem:[#allocation2 + $0x8] sm:$0xff]
    %42 = vst [vmem:[#allocation7] sm:$0xff] %v40
    %43 = vst [vmem:[#allocation7 + $0x8] sm:$0xff] %v41
    %v44 = vld [vmem:[#allocation5] sm:$0xff]
    %v45 = vld [vmem:[#allocation5 + $0x8] sm:$0xff]
    %v46 = vld [vmem:[#allocation5 + $0x10] sm:$0xff]
    %47 = vst [vmem:[#allocation7 + $0x10] sm:$0xff] %v44
    %48 = vst [vmem:[#allocation7 + $0x18] sm:$0xff] %v45
    %49 = vst [vmem:[#allocation7 + $0x20] sm:$0xff] %v46
    // Predicated region
    $region18: #{tpu_custom_call.1} parent=1 // pred_check
      _
    $region19: #{tpu_custom_call.1} parent=1 // pred_check_branch
      %51 = sbr.rel (0) target = $region21
    $region20: #{tpu_custom_call.1} parent=1 // pred_region
      %53 = vsyncadd [#allocation4], 0
      %s55 = sshll.u32 [#allocation7], 4
      %s56 = int_to_ptr.vmem [resolvable:$true] %s55
      %s57 = sshll.u32 %s2, 4
      %s58 = int_to_ptr.hbm [resolvable:$true] %s57
      %60 = dma.vmem_to_hbm [thread:$0]  %s56, 640, %s58, [#allocation4]
    $region21: #{tpu_custom_call.1} parent=1 // pred_fallthru
      _
    // Predicated region
    $region22: #{tpu_custom_call.1} parent=1 // pred_check
      _
    $region23: #{tpu_custom_call.1} parent=1 // pred_check_branch
      %62 = sbr.rel (0) target = $region25
    $region24: #{tpu_custom_call.1} parent=1 // pred_region
      %64 = dma.done [#allocation4], 640
    $region25: #{tpu_custom_call.1} parent=1 // pred_fallthru
      _
    %65 = vsyncpa [#allocation3], 1
    %66 = vsyncpa [#allocation6], 1
    %67 = vsyncpa [#allocation4], 1

</llo_original>
